<compile_context>
chip_gen: v6e
topology: v6e:2x2x1
jax: 0.10.0
libtpu: 0.0.40
codegen_flags: <defaults>
</compile_context>

<pallas_src>
import functools

import jax
import jax.numpy as jnp
from jax.experimental import pallas as pl
from jax.experimental.pallas import tpu as pltpu

_LN2 = 0.6931471805599453


def _jsd_kernel(p_ref, q_ref, out_ref, acc_ref, *,
                n_rows, row_tile, tiles_per_chunk, needs_mask):
    ci = pl.program_id(0)   # chunk index  ("parallel": v7x 2-TC / megacore split)
    j = pl.program_id(1)    # tile within chunk ("arbitrary": reduction axis)

    @pl.when(j == 0)
    def _init():
        acc_ref[...] = jnp.zeros_like(acc_ref)

    p = p_ref[...].astype(jnp.float32)
    q = q_ref[...].astype(jnp.float32)

    # log m = log(0.5*(p+q)) = log(p+q) - ln2  (fold the 0.5 into +ln2 below)
    log_s = jnp.log(p + q)
    log_p = jnp.log(p)
    log_q = jnp.log(q)

    if needs_mask:
        # Logical (unclamped) row offset of this grid point: rows >= n_rows are
        # garbage (partially out-of-bounds last tile, or a clamped overhang
        # tile) and must contribute nothing.
        row0 = (ci * tiles_per_chunk + j) * row_tile
        row_ids = row0 + jax.lax.broadcasted_iota(jnp.int32, p.shape, 0)
        valid = row_ids < n_rows
        p_ok = valid & (p > 0)
        q_ok = valid & (q > 0)
    else:
        # xlogy-style guard only: 0 * log(0) contributes 0.
        p_ok = p > 0
        q_ok = q > 0

    kl_p = jnp.where(p_ok, p * (log_p + _LN2 - log_s), 0.0)
    kl_q = jnp.where(q_ok, q * (log_q + _LN2 - log_s), 0.0)

    # Elementwise accumulate into a VMEM tile (VPU only) — no per-step
    # cross-lane reduction, better f32 accumulation accuracy for large N.
    acc_ref[...] += kl_p + kl_q

    @pl.when(j == pl.num_programs(1) - 1)
    def _finalize():
        total = jnp.sum(acc_ref[...])
        rows = jax.lax.broadcasted_iota(jnp.int32, (8, 128), 0)
        lanes = jax.lax.broadcasted_iota(jnp.int32, (8, 128), 1)
        out_ref[...] = jnp.where((rows == 0) & (lanes == 0), total, 0.0)


def _pick_row_tile(n_rows, c):
    # Budget: 2 inputs x 2 pipeline buffers + 1 accumulator tile <= ~24 MiB,
    # which fits v7x's smaller VMEM and (with an explicit limit) v5e's default.
    budget_bytes = 24 * 1024 * 1024
    rt = budget_bytes // (5 * 4 * c)
    rt = (rt // 16) * 16                  # multiple of 16 (bf16-safe sublane tile)
    rt = max(16, min(rt, 1024))
    # No point tiling beyond the (16-rounded) total row count.
    rt = min(rt, max(16, ((n_rows + 15) // 16) * 16))
    return rt


def jsd(p: jax.Array, q: jax.Array, *, row_tile=None) -> jax.Array:
    """Jensen-Shannon divergence matching the PyTorch JSD module. Returns a scalar."""
    c = p.shape[-1]
    p2 = p.reshape(-1, c)
    q2 = q.reshape(-1, c)
    n = p2.shape[0]                       # 'batchmean' denominator

    if row_tile is None:
        row_tile = _pick_row_tile(n, c)
    assert row_tile % 8 == 0

    num_tiles = pl.cdiv(n, row_tile)
    n_chunks = 2 if num_tiles >= 2 else 1           # 2 partials -> both TCs on v7x
    tiles_per_chunk = pl.cdiv(num_tiles, n_chunks)

    # Masking only needed when the grid over-covers the valid rows.
    needs_mask = (n_chunks * tiles_per_chunk * row_tile) != n

    kernel = functools.partial(
        _jsd_kernel, n_rows=n, row_tile=row_tile,
        tiles_per_chunk=tiles_per_chunk, needs_mask=needs_mask)

    if n_chunks * tiles_per_chunk == num_tiles:
        def in_map(ci, j):
            return (ci * tiles_per_chunk + j, 0)
    else:
        def in_map(ci, j):
            # Clamp the overhang grid point to the last real tile; the row-id
            # mask zeroes out its contribution.
            return (jnp.minimum(ci * tiles_per_chunk + j, num_tiles - 1), 0)

    tile_bytes = row_tile * c * 4
    vmem_limit = max(16 << 20, min(5 * tile_bytes + (4 << 20), 40 << 20))

    partials = pl.pallas_call(
        kernel,
        out_shape=jax.ShapeDtypeStruct((n_chunks * 8, 128), jnp.float32),
        grid_spec=pltpu.PrefetchScalarGridSpec(
            num_scalar_prefetch=0,
            grid=(n_chunks, tiles_per_chunk),
            in_specs=[
                pl.BlockSpec((row_tile, c), in_map),
                pl.BlockSpec((row_tile, c), in_map),
            ],
            out_specs=pl.BlockSpec((8, 128), lambda ci, j: (ci, 0)),
            scratch_shapes=[pltpu.VMEM((row_tile, c), jnp.float32)],
        ),
        compiler_params=pltpu.CompilerParams(
            dimension_semantics=("parallel", "arbitrary"),
            vmem_limit_bytes=int(vmem_limit),
        ),
    )(p2, q2)

    # Per-chunk partial sums live at [chunk*8, 0]; everything else is zero.
    return (0.5 / n) * jnp.sum(partials)


def _jsd_reference(p: jax.Array, q: jax.Array) -> jax.Array:
    c = p.shape[-1]
    p2 = p.reshape(-1, c).astype(jnp.float32)
    q2 = q.reshape(-1, c).astype(jnp.float32)
    n = p2.shape[0]
    m = jnp.log(0.5 * (p2 + q2))
    kl_p = jnp.sum(jnp.where(p2 > 0, p2 * (jnp.log(p2) - m), 0.0)) / n
    kl_q = jnp.sum(jnp.where(q2 > 0, q2 * (jnp.log(q2) - m), 0.0)) / n
    return 0.5 * (kl_p + kl_q)


if __name__ == "__main__":
    key = jax.random.PRNGKey(0)
    kp, kq = jax.random.split(key)

    # (batch=2, seq=8, classes=128): lane-aligned class dim, N=16 rows.
    logits_p = jax.random.normal(kp, (2, 8, 128), dtype=jnp.float32)
    logits_q = jax.random.normal(kq, (2, 8, 128), dtype=jnp.float32)
    p = jax.nn.softmax(logits_p, axis=-1)
    q = jax.nn.softmax(logits_q, axis=-1)

    out = jsd(p, q)
    jax.block_until_ready(out)
    ref = _jsd_reference(p, q)
    assert jnp.allclose(out, ref, rtol=1e-5, atol=1e-6), (out, ref)

    # Ragged row count (N=15, not a multiple of the tile) exercises the
    # in-kernel row mask that replaced the wrapper-side jnp.pad.
    kp2, kq2 = jax.random.split(jax.random.PRNGKey(1))
    p_r = jax.nn.softmax(jax.random.normal(kp2, (3, 5, 128), jnp.float32), axis=-1)
    q_r = jax.nn.softmax(jax.random.normal(kq2, (3, 5, 128), jnp.float32), axis=-1)
    out_r = jsd(p_r, q_r)
    jax.block_until_ready(out_r)
    ref_r = _jsd_reference(p_r, q_r)
    assert jnp.allclose(out_r, ref_r, rtol=1e-5, atol=1e-6), (out_r, ref_r)

    print("KERNEL_OK")
</pallas_src>

<mosaic_0001>
module attributes {stable_mosaic.version = 11 : i64} {
  func.func @_jsd_kernel(%arg0: i32, %arg1: i32, %arg2: memref<16x128xf32, #tpu.memory_space<vmem>>, %arg3: memref<16x128xf32, #tpu.memory_space<vmem>>, %arg4: memref<8x128xf32, #tpu.memory_space<vmem>>, %arg5: memref<16x128xf32, #tpu.memory_space<vmem>>) attributes {dimension_semantics = [#tpu.dimension_semantics<parallel>, #tpu.dimension_semantics<arbitrary>], iteration_bounds = array<i64: 1, 1>, scalar_prefetch = 0 : i64, scratch_operands = 1 : i64, tpu.core_type = #tpu.core_type<tc>, window_params = [{transform_indices = @transform_0, window_bounds = array<i64: 16, 128>}, {transform_indices = @transform_1, window_bounds = array<i64: 16, 128>}, {transform_indices = @transform_2, window_bounds = array<i64: 8, 128>}]} {
    %c0_i32 = arith.constant 0 : i32
    %0 = arith.cmpi eq, %arg1, %c0_i32 : i32
    %1 = arith.extui %0 : i1 to i32
    %c0_i32_0 = arith.constant 0 : i32
    %2 = arith.cmpi ne, %1, %c0_i32_0 : i32
    scf.if %2 {
      %cst_15 = arith.constant 0.000000e+00 : f32
      %32 = vector.broadcast %cst_15 : f32 to vector<16x128xf32>
      %c0_16 = arith.constant 0 : index
      %c0_17 = arith.constant 0 : index
      %33 = vector.load %arg5[%c0_16, %c0_17] : memref<16x128xf32, #tpu.memory_space<vmem>>, vector<16x128xf32>
      tpu.vector_store %arg5[%c0_16, %c0_17], %32 {strides = array<i32>} : memref<16x128xf32, #tpu.memory_space<vmem>>, vector<16x128xf32>,
    } else {
    }
    %c0 = arith.constant 0 : index
    %c0_1 = arith.constant 0 : index
    %3 = vector.load %arg2[%c0, %c0_1] : memref<16x128xf32, #tpu.memory_space<vmem>>, vector<16x128xf32>
    %c0_2 = arith.constant 0 : index
    %c0_3 = arith.constant 0 : index
    %4 = vector.load %arg3[%c0_2, %c0_3] : memref<16x128xf32, #tpu.memory_space<vmem>>, vector<16x128xf32>
    %5 = arith.addf %3, %4 : vector<16x128xf32>
    %6 = math.log %5 : vector<16x128xf32>
    %7 = math.log %3 : vector<16x128xf32>
    %8 = math.log %4 : vector<16x128xf32>
    %cst = arith.constant 0.000000e+00 : f32
    %9 = vector.broadcast %cst : f32 to vector<16x128xf32>
    %10 = arith.cmpf ogt, %3, %9 : vector<16x128xf32>
    %cst_4 = arith.constant 0.000000e+00 : f32
    %11 = vector.broadcast %cst_4 : f32 to vector<16x128xf32>
    %12 = arith.cmpf ogt, %4, %11 : vector<16x128xf32>
    %cst_5 = arith.constant 0.693147182 : f32
    %13 = vector.broadcast %cst_5 : f32 to vector<16x128xf32>
    %14 = arith.addf %7, %13 : vector<16x128xf32>
    %15 = arith.subf %14, %6 : vector<16x128xf32>
    %16 = arith.mulf %3, %15 : vector<16x128xf32>
    %cst_6 = arith.constant 0.000000e+00 : f32
    %17 = vector.broadcast %cst_6 : f32 to vector<16x128xf32>
    %18 = arith.select %10, %16, %17 : vector<16x128xi1>, vector<16x128xf32>
    %cst_7 = arith.constant 0.693147182 : f32
    %19 = vector.broadcast %cst_7 : f32 to vector<16x128xf32>
    %20 = arith.addf %8, %19 : vector<16x128xf32>
    %21 = arith.subf %20, %6 : vector<16x128xf32>
    %22 = arith.mulf %4, %21 : vector<16x128xf32>
    %cst_8 = arith.constant 0.000000e+00 : f32
    %23 = vector.broadcast %cst_8 : f32 to vector<16x128xf32>
    %24 = arith.select %12, %22, %23 : vector<16x128xi1>, vector<16x128xf32>
    %c0_9 = arith.constant 0 : index
    %c0_10 = arith.constant 0 : index
    %25 = vector.load %arg5[%c0_9, %c0_10] : memref<16x128xf32, #tpu.memory_space<vmem>>, vector<16x128xf32>
    %26 = arith.addf %18, %24 : vector<16x128xf32>
    %27 = arith.addf %25, %26 : vector<16x128xf32>
    %c0_11 = arith.constant 0 : index
    %c0_12 = arith.constant 0 : index
    %28 = vector.load %arg5[%c0_11, %c0_12] : memref<16x128xf32, #tpu.memory_space<vmem>>, vector<16x128xf32>
    tpu.vector_store %arg5[%c0_11, %c0_12], %27 {strides = array<i32>} : memref<16x128xf32, #tpu.memory_space<vmem>>, vector<16x128xf32>,
    %c0_i32_13 = arith.constant 0 : i32
    %29 = arith.cmpi eq, %arg1, %c0_i32_13 : i32
    %30 = arith.extui %29 : i1 to i32
    %c0_i32_14 = arith.constant 0 : i32
    %31 = arith.cmpi ne, %30, %c0_i32_14 : i32
    scf.if %31 {
      %c0_15 = arith.constant 0 : index
      %c0_16 = arith.constant 0 : index
      %32 = vector.load %arg5[%c0_15, %c0_16] : memref<16x128xf32, #tpu.memory_space<vmem>>, vector<16x128xf32>
      %33 = vector.shape_cast %32 : vector<16x128xf32> to vector<1x16x128xf32>
      %cst_17 = arith.constant dense<0.000000e+00> : vector<1xf32>
      %34 = vector.multi_reduction <add>, %33, %cst_17 [1, 2] : vector<1x16x128xf32> to vector<1xf32>
      %35 = vector.shape_cast %34 : vector<1xf32> to vector<1x1x1xf32>
      %36 = vector.extract %35[0, 0, 0] : f32 from vector<1x1x1xf32>
      %37 = tpu.iota {dimensions = array<i32: 0>} : vector<8x128xi32>
      %38 = tpu.iota {dimensions = array<i32: 1>} : vector<8x128xi32>
      %c0_i32_18 = arith.constant 0 : i32
      %39 = vector.broadcast %c0_i32_18 : i32 to vector<8x128xi32>
      %40 = arith.cmpi eq, %37, %39 : vector<8x128xi32>
      %c0_i32_19 = arith.constant 0 : i32
      %41 = vector.broadcast %c0_i32_19 : i32 to vector<8x128xi32>
      %42 = arith.cmpi eq, %38, %41 : vector<8x128xi32>
      %43 = arith.andi %40, %42 : vector<8x128xi1>
      %cst_20 = arith.constant 0.000000e+00 : f32
      %44 = vector.broadcast %36 : f32 to vector<8x128xf32>
      %45 = vector.broadcast %cst_20 : f32 to vector<8x128xf32>
      %46 = arith.select %43, %44, %45 : vector<8x128xi1>, vector<8x128xf32>
      %c0_21 = arith.constant 0 : index
      %c0_22 = arith.constant 0 : index
      %47 = vector.load %arg4[%c0_21, %c0_22] : memref<8x128xf32, #tpu.memory_space<vmem>>, vector<8x128xf32>
      tpu.vector_store %arg4[%c0_21, %c0_22], %46 {strides = array<i32>} : memref<8x128xf32, #tpu.memory_space<vmem>>, vector<8x128xf32>,
    } else {
    }
    return
  }
  func.func @transform_0(%arg0: i32, %arg1: i32) -> (i32, i32) {
    %c1_i32 = arith.constant 1 : i32
    %0 = arith.muli %arg0, %c1_i32 : i32
    %1 = arith.addi %0, %arg1 : i32
    %c0_i32 = arith.constant 0 : i32
    %c0_i32_0 = arith.constant 0 : i32
    return %1, %c0_i32 : i32, i32
  }
  func.func @transform_1(%arg0: i32, %arg1: i32) -> (i32, i32) {
    %c1_i32 = arith.constant 1 : i32
    %0 = arith.muli %arg0, %c1_i32 : i32
    %1 = arith.addi %0, %arg1 : i32
    %c0_i32 = arith.constant 0 : i32
    %c0_i32_0 = arith.constant 0 : i32
    return %1, %c0_i32 : i32, i32
  }
  func.func @transform_2(%arg0: i32, %arg1: i32) -> (i32, i32) {
    %c0_i32 = arith.constant 0 : i32
    %c0_i32_0 = arith.constant 0 : i32
    return %arg0, %c0_i32 : i32, i32
  }
}

</mosaic_0001>

<llo_original>
// kernel: tpu_custom_call.1
$region0: #{tpu_custom_call.1}
  #allocation0 [shape = 'u32[]', space=smem, size = 0x4, offset = 0x4, fixed_abs, tag = 'smem constant byte address 0x4 - core index']
  #allocation1 [shape = 'u32[144,128]{1,0:T(1,128)}', space=vmem, size = 0x12000, scoped, tag = 'internal scratch']
  #allocation2 [shape = 'f32[16,128]{1,0:T(8,128)}', space=vmem, size = 0x2000, scoped, tag = 'scratch operand']
  %s0 = inlined_call_operand.hbm [shape: f32[16,128], index: 0, kind: input, shape index: {}]
  %s1 = inlined_call_operand.hbm [shape: f32[16,128], index: 1, kind: input, shape index: {}]
  %s2 = inlined_call_operand.hbm [shape: f32[8,128], index: 2, kind: output, shape index: {}]
  %s3 = sld [smem:[#allocation0]]
  $region34: #{tpu_custom_call.1} parent=0
    _
  %s5 = ssub.s32 1, %s3
  %s6 = scalar_select 0, %s5, %s3
  $region1: #{tpu_custom_call.1} parent=0
    #allocation3 [shape = 'u8[8192]{0}', space=vmem, size = 0x2000, scoped, tag = 'input window, operand 0, single buffered']
    #allocation4 [shape = 's32[1]{0}', space=sflag, size = 0x4, scoped, tag = 'scoped memory for tpu_custom_call.1']
    #allocation5 [shape = 's32[1]{0}', space=sflag, size = 0x4, scoped, tag = 'scoped memory for tpu_custom_call.1']
    #allocation6 [shape = 'u8[8192]{0}', space=vmem, size = 0x2000, scoped, tag = 'input window, operand 1, single buffered']
    #allocation7 [shape = 's32[1]{0}', space=sflag, size = 0x4, scoped, tag = 'scoped memory for tpu_custom_call.1']
    #allocation8 [shape = 'u8[4096]{0}', space=vmem, size = 0x1000, scoped, tag = 'output window, operand 0, single buffered']
    %7 = vsyncpa [#allocation4], 0
    %8 = vsyncpa [#allocation7], 0
    %9 = vsyncpa [#allocation5], 0
    // Predicated region
    $region2: #{tpu_custom_call.1} parent=1 // pred_check
      _
    $region3: #{tpu_custom_call.1} parent=1 // pred_check_branch
      %11 = sbr.rel (0) target = $region5
    $region4: #{tpu_custom_call.1} parent=1 // pred_region
      %s12 = sadd.s32 0, 0
      %s13 = smul.u32 2, %s12
      %s15 = ssub.s32 256, 256
      %16 = vsyncadd [#allocation4], %s15
      %s17 = smul.addr %s13, 128
      %s18 = scalar_lea.hbm %s0, %s17
      %s19 = sshll.u32 [#allocation3], 4
      %s20 = int_to_ptr.vmem [resolvable:$true] %s19
      %25 = dma.hbm_to_vmem [thread:$0]  %s18, 256, %s20, [#allocation4], 128, 128, 8
    $region5: #{tpu_custom_call.1} parent=1 // pred_fallthru
      _
    // Predicated region
    $region6: #{tpu_custom_call.1} parent=1 // pred_check
      _
    $region7: #{tpu_custom_call.1} parent=1 // pred_check_branch
      %27 = sbr.rel (0) target = $region9
    $region8: #{tpu_custom_call.1} parent=1 // pred_region
      %s28 = sadd.s32 0, 0
      %s29 = smul.u32 2, %s28
      %s31 = ssub.s32 256, 256
      %32 = vsyncadd [#allocation7], %s31
      %s33 = smul.addr %s29, 128
      %s34 = scalar_lea.hbm %s1, %s33
      %s35 = sshll.u32 [#allocation6], 4
      %s36 = int_to_ptr.vmem [resolvable:$true] %s35
      %41 = dma.hbm_to_vmem [thread:$0]  %s34, 256, %s36, [#allocation7], 128, 128, 8
    $region9: #{tpu_custom_call.1} parent=1 // pred_fallthru
      _
    // Predicated region
    $region10: #{tpu_custom_call.1} parent=1 // pred_check
      _
    $region11: #{tpu_custom_call.1} parent=1 // pred_check_branch
      %43 = sbr.rel (0) target = $region13
    $region12: #{tpu_custom_call.1} parent=1 // pred_region
      %44 = dma.done [#allocation4], 256
    $region13: #{tpu_custom_call.1} parent=1 // pred_fallthru
      _
    // Predicated region
    $region14: #{tpu_custom_call.1} parent=1 // pred_check
      _
    $region15: #{tpu_custom_call.1} parent=1 // pred_check_branch
      %46 = sbr.rel (0) target = $region17
    $region16: #{tpu_custom_call.1} parent=1 // pred_region
      %47 = dma.done [#allocation7], 256
    $region17: #{tpu_custom_call.1} parent=1 // pred_fallthru
      _
    %s48 = sadd.s32 0, 0
    %s49 = smul.u32 2, %s48
    %s50 = sadd.s32 0, 0
    %s51 = smul.u32 2, %s50
    %p52 = scmp.eq.s32.totalorder 0, 0
    // Predicated region
    $region18: #{tpu_custom_call.1} parent=1 // pred_check
      %p53 = pneg %p52
    $region19: #{tpu_custom_call.1} parent=1 // pred_check_branch
      %55 = sbr.rel (%p53) target = $region21
    $region20: #{tpu_custom_call.1} parent=1 // pred_region
      %56 = vst [vmem:[#allocation2] sm:$0xff] 0.0
      %57 = vst [vmem:[#allocation2 + $0x8] sm:$0xff] 0.0
    $region21: #{tpu_custom_call.1} parent=1 // pred_fallthru
      _
    %v58 = vld [vmem:[#allocation3] sm:$0xff]
    %v59 = vld [vmem:[#allocation3 + $0x8] sm:$0xff]
    %v60 = vld [vmem:[#allocation6] sm:$0xff]
    %v61 = vld [vmem:[#allocation6 + $0x8] sm:$0xff]
    %v62 = vadd.f32 %v58, %v60
    %v63 = vadd.f32 %v59, %v61
    %v64 = vlog2.pop %v62
    %v65 = vmul.f32 %v64, 0.6931472
    %v66 = vlog2.pop %v63
    %v67 = vmul.f32 %v66, 0.6931472
    %v68 = vlog2.pop %v58
    %v69 = vmul.f32 %v68, 0.6931472
    %v70 = vlog2.pop %v59
    %v71 = vmul.f32 %v70, 0.6931472
    %v72 = vlog2.pop %v60
    %v73 = vmul.f32 %v72, 0.6931472
    %v74 = vlog2.pop %v61
    %v75 = vmul.f32 %v74, 0.6931472
    %vm76 = vcmp.gt.f32.partialorder %v58, 0.0
    %vm77 = vcmp.gt.f32.partialorder %v59, 0.0
    %vm78 = vcmp.gt.f32.partialorder %v60, 0.0
    %vm79 = vcmp.gt.f32.partialorder %v61, 0.0
    %v80 = vadd.f32 %v69, 0.6931472
    %v81 = vadd.f32 %v71, 0.6931472
    %v82 = vsub.f32 %v80, %v65
    %v83 = vsub.f32 %v81, %v67
    %v84 = vmul.f32 %v58, %v82
    %v85 = vmul.f32 %v59, %v83
    %v86 = vsel %vm76, %v84, 0.0
    %v87 = vsel %vm77, %v85, 0.0
    %v88 = vadd.f32 %v73, 0.6931472
    %v89 = vadd.f32 %v75, 0.6931472
    %v90 = vsub.f32 %v88, %v65
    %v91 = vsub.f32 %v89, %v67
    %v92 = vmul.f32 %v60, %v90
    %v93 = vmul.f32 %v61, %v91
    %v94 = vsel %vm78, %v92, 0.0
    %v95 = vsel %vm79, %v93, 0.0
    %v96 = vld [vmem:[#allocation2] sm:$0xff]
    %v97 = vld [vmem:[#allocation2 + $0x8] sm:$0xff]
    %v98 = vadd.f32 %v86, %v94
    %v99 = vadd.f32 %v87, %v95
    %v100 = vadd.f32 %v96, %v98
    %v101 = vadd.f32 %v97, %v99
    %102 = vst [vmem:[#allocation2] sm:$0xff] %v100
    %103 = vst [vmem:[#allocation2 + $0x8] sm:$0xff] %v101
    // Predicated region
    $region22: #{tpu_custom_call.1} parent=1 // pred_check
      %p104 = pneg %p52
    $region23: #{tpu_custom_call.1} parent=1 // pred_check_branch
      %106 = sbr.rel (%p104) target = $region25
    $region24: #{tpu_custom_call.1} parent=1 // pred_region
      %v107 = vld [vmem:[#allocation2] sm:$0xff]
      %v108 = vld [vmem:[#allocation2 + $0x8] sm:$0xff]
      %v109 = vadd.f32 %v107, %v108
      %110 = vadd.xlane.f32.xlu0 %v109
      %v111 = vpop.xlane.xlu0 %110
      %v112 = vrot.slane %v111, 4
      %v113 = vadd.f32 %v111, %v112
      %v114 = vrot.slane %v113, 2
      %v115 = vadd.f32 %v113, %v114
      %v116 = vrot.slane %v115, 1
      %v117 = vadd.f32 %v115, %v116
      %s118 = vtos %v117
      %v119 = vlaneseq
      %v120 = vshrl.u32 %v119, 7
      %v121 = vlaneseq
      %v122 = vand.u32 %v121, 127
      %vm123 = vcmp.eq.s32.totalorder %v120, 0
      %vm124 = vcmp.eq.s32.totalorder %v122, 0
      %vm125 = vmand %vm123, %vm124
      %v126 = vstv %s118
      %v127 = vsel %vm125, %v126, 0.0
      %128 = vst [vmem:[#allocation8] sm:$0xff] %v127
    $region25: #{tpu_custom_call.1} parent=1 // pred_fallthru
      _
    // Predicated region
    $region26: #{tpu_custom_call.1} parent=1 // pred_check
      _
    $region27: #{tpu_custom_call.1} parent=1 // pred_check_branch
      %130 = sbr.rel (0) target = $region29
    $region28: #{tpu_custom_call.1} parent=1 // pred_region
      %s132 = ssub.s32 128, 128
      %133 = vsyncadd [#allocation5], %s132
      %s135 = sshll.u32 [#allocation8], 4
      %s136 = int_to_ptr.vmem [resolvable:$true] %s135
      %138 = dma.vmem_to_hbm [thread:$0]  %s136, 128, %s2, [#allocation5]
    $region29: #{tpu_custom_call.1} parent=1 // pred_fallthru
      _
    // Predicated region
    $region30: #{tpu_custom_call.1} parent=1 // pred_check
      _
    $region31: #{tpu_custom_call.1} parent=1 // pred_check_branch
      %140 = sbr.rel (0) target = $region33
    $region32: #{tpu_custom_call.1} parent=1 // pred_region
      %141 = dma.done [#allocation5], 128
    $region33: #{tpu_custom_call.1} parent=1 // pred_fallthru
      _
    %142 = vsyncpa [#allocation4], 1
    %143 = vsyncpa [#allocation7], 1
    %144 = vsyncpa [#allocation5], 1

</llo_original>
